<compile_context>
chip_gen: v7x
topology: tpu7x:2x2x1
jax: 0.10.0
libtpu: 0.0.40
codegen_flags: <defaults>
</compile_context>

<pallas_src>
import functools

import numpy as np
import jax
import jax.numpy as jnp
from jax import lax
from jax.experimental import pallas as pl
from jax.experimental.pallas import tpu as pltpu

ALPHA = 0.1
BETA = 0.01

_VMEM_LIMIT_BYTES = 32 * 1024 * 1024   # scoped VMEM limit handed to Mosaic
_BLOCK_BYTES_TARGET = 3 << 19          # ~1.5 MiB of f32 sr per grid step


# ----------------------------------------------------------------------------
# Host-side helpers: bicubic-downsample matrix (replicates F.interpolate
# mode='bicubic', align_corners=False, antialias=False with border clamping),
# the rank-1 mass-term coefficient vector, and the Laplacian edge masks.
# ----------------------------------------------------------------------------
def _cubic_weight(d, a=-0.75):
    d = abs(float(d))
    if d <= 1.0:
        return (a + 2.0) * d ** 3 - (a + 3.0) * d ** 2 + 1.0
    elif d < 2.0:
        return a * d ** 3 - 5.0 * a * d ** 2 + 8.0 * a * d - 4.0 * a
    return 0.0


def bicubic_downsample_matrix(n_in, n_out):
    # TODO(synk): verify this matrix end-to-end against
    # torch.nn.functional.interpolate(mode='bicubic') once on a torch host.
    R = np.zeros((n_out, n_in), dtype=np.float32)
    scale = n_in / n_out
    for i in range(n_out):
        x = (i + 0.5) * scale - 0.5
        x0 = int(np.floor(x))
        t = x - x0
        for off in (-1, 0, 1, 2):
            idx = min(max(x0 + off, 0), n_in - 1)   # border clamp (PyTorch)
            R[i, idx] += _cubic_weight(t - off)
    return R


def _mass_coefficients(H, W):
    """c such that  mean(bicubic_down(x)) - mean(x) == sum_j c_j * x_j  (exact)."""
    Ho, Wo = H // 2, W // 2
    u = bicubic_downsample_matrix(H, Ho).sum(axis=0)          # (H,) column sums
    v = bicubic_downsample_matrix(W, Wo).sum(axis=0)          # (W,)
    w = np.outer(u, v).reshape(-1) / float(Ho * Wo)           # (H*W,)
    c = w - 1.0 / float(H * W)
    return c.astype(np.float32).reshape(H * W, 1)             # (L, 1) for MXU


def _laplacian_masks(H, W):
    """f32 masks zeroing the zero-padded-boundary neighbours, per direction."""
    L = H * W
    j = np.arange(L)
    m = np.ones((4, L), dtype=np.float32)
    m[0, j % W == 0] = 0.0          # left  neighbour (j-1) invalid in col 0
    m[1, j % W == W - 1] = 0.0      # right neighbour (j+1) invalid in col W-1
    m[2, j < W] = 0.0               # up    neighbour (j-W) invalid in row 0
    m[3, j >= (H - 1) * W] = 0.0    # down  neighbour (j+W) invalid in row H-1
    return m


# ----------------------------------------------------------------------------
# Pallas kernel.  Grid = (num_splits, n_inner): the leading axis is "parallel"
# (one output block + one SMEM accumulator per TensorCore on v7x), the inner
# axis streams TB planes per step and accumulates three raw partial sums.
# ----------------------------------------------------------------------------
def _loss_kernel(sr_ref, hr_ref, mask_ref, c_ref, out_ref, acc_ref, *, width):
    j = pl.program_id(1)

    @pl.when(j == 0)
    def _init():
        acc_ref[0] = jnp.float32(0.0)
        acc_ref[1] = jnp.float32(0.0)
        acc_ref[2] = jnp.float32(0.0)

    sr = sr_ref[...].astype(jnp.float32)            # (TB, L): planes x (H*W)
    TB, L = sr.shape

    # ---- base: L1 partial sum (first, so hr's registers die early) --------
    acc_ref[0] += jnp.sum(jnp.abs(sr - hr_ref[...].astype(jnp.float32)))

    # ---- mass conservation: one MXU mat-vec per block ----------------------
    # per-plane diff = mean(bicubic_down(x)) - mean(x) = x . c  (c precomputed)
    diff = jnp.dot(sr, c_ref[...], preferred_element_type=jnp.float32)  # (TB,1)
    acc_ref[1] += jnp.sum(diff * diff)

    # ---- lensing: zero-padded 5-pt Laplacian via lane rolls + f32 masks ----
    # Each sublane row is one whole flattened plane, so lane rolls never mix
    # planes; the wrapped positions are exactly the mask zeros.
    m = mask_ref[...]                                # (4, L) f32
    neigh = (pltpu.roll(sr, 1, 1) * m[0:1, :]            # left  -> x[j-1]
             + pltpu.roll(sr, L - 1, 1) * m[1:2, :]      # right -> x[j+1]
             + pltpu.roll(sr, width, 1) * m[2:3, :]      # up    -> x[j-W]
             + pltpu.roll(sr, L - width, 1) * m[3:4, :])  # down -> x[j+W]
    # residual = laplacian - 2*kappa; kappa == channel mean == sr (C == 1)
    res = neigh - 6.0 * sr
    acc_ref[2] += jnp.sum(res * res)
    # TODO(synk): for very small H*W the three per-step reduce trees rival the
    # roll cost; accumulate per-vreg partials in a VMEM accumulator and reduce
    # only in the finalize (plus a compensated sum) if bundles show it.

    # ---- finalize: write this split's raw partial sums into lanes 0..2 -----
    @pl.when(j == pl.num_programs(1) - 1)
    def _fin():
        lane = lax.broadcasted_iota(jnp.int32, (1, 1, 128), 2)
        out_ref[...] = jnp.where(
            lane == 0, acc_ref[0],
            jnp.where(lane == 1, acc_ref[1],
                      jnp.where(lane == 2, acc_ref[2], 0.0)))


def physics_constrained_loss(sr, hr, alpha=ALPHA, beta=BETA,
                             planes_per_step=None):
    N, C, H, W = sr.shape
    assert hr.shape == sr.shape
    assert C == 1, "torch module's [1,1,3,3] conv weights require C == 1"
    assert H % 2 == 0 and W % 2 == 0, "bicubic 0.5x path assumes even H, W"
    P = N * C
    L = H * W

    # Pure metadata reshape (no HBM copy): planes on sublanes, H*W on lanes.
    sr2 = sr.reshape(P, L)
    hr2 = hr.reshape(P, L)

    masks = jnp.asarray(_laplacian_masks(H, W))      # (4, L) f32
    cvec = jnp.asarray(_mass_coefficients(H, W))     # (L, 1) f32

    # ---- tile size / VMEM budget -------------------------------------------
    # Per step (f32 worst case): sr+hr blocks double-buffered (~4x) plus ~6
    # live lens temporaries (~6x)  =>  ~10x the sr block.
    if planes_per_step is None:
        planes_per_step = max(8, _BLOCK_BYTES_TARGET // (L * 4))
    tb_cap = -(-P // 8) * 8                          # round_up(P, 8)
    tb_target = max(8, (int(planes_per_step) // 8) * 8)
    tb = min(tb_target, tb_cap)
    assert 10 * tb * L * 4 <= _VMEM_LIMIT_BYTES, (
        "single-plane block exceeds the VMEM budget")
    # TODO(synk): split the lane (H*W) axis across grid steps for very large
    # planes instead of asserting.

    n_blocks = -(-P // tb)                           # cdiv
    num_splits = 2 if n_blocks >= 2 else 1           # 2 TensorCores on v7x;
                                                     # plain loop on v5e/v6e
    n_inner = -(-n_blocks // num_splits)
    p_pad = num_splits * n_inner * tb
    if p_pad != P:
        # Zero planes contribute exactly 0 to every partial sum, and we divide
        # by the true P below, so padding is semantics-free.
        sr2 = jnp.pad(sr2, ((0, p_pad - P), (0, 0)))
        hr2 = jnp.pad(hr2, ((0, p_pad - P), (0, 0)))

    kernel = functools.partial(_loss_kernel, width=W)

    partials = pl.pallas_call(
        kernel,
        out_shape=jax.ShapeDtypeStruct((num_splits, 1, 128), jnp.float32),
        grid_spec=pltpu.PrefetchScalarGridSpec(
            num_scalar_prefetch=0,
            grid=(num_splits, n_inner),
            in_specs=[
                pl.BlockSpec((tb, L), lambda s, j: (s * n_inner + j, 0)),  # sr
                pl.BlockSpec((tb, L), lambda s, j: (s * n_inner + j, 0)),  # hr
                pl.BlockSpec((4, L), lambda s, j: (0, 0)),    # edge masks
                pl.BlockSpec((L, 1), lambda s, j: (0, 0)),    # mass coeffs
            ],
            out_specs=pl.BlockSpec((1, 1, 128), lambda s, j: (s, 0, 0)),
            scratch_shapes=[pltpu.SMEM((3,), jnp.float32)],
        ),
        compiler_params=pltpu.CompilerParams(
            dimension_semantics=("parallel", "arbitrary"),
            vmem_limit_bytes=_VMEM_LIMIT_BYTES),
    )(sr2, hr2, masks, cvec)

    sums = jnp.sum(partials[:, 0, 0:3], axis=0)      # (3,) raw partial sums
    total = jnp.float32(P * H * W)
    return (sums[0] / total
            + jnp.float32(alpha) * sums[1] / jnp.float32(P)
            + jnp.float32(beta) * sums[2] / total)


# ----------------------------------------------------------------------------
# Host-side float64 NumPy reference (faithful to the torch formulation).
# ----------------------------------------------------------------------------
def reference_loss_np(sr, hr, alpha=ALPHA, beta=BETA):
    sr = np.asarray(sr, np.float64)
    hr = np.asarray(hr, np.float64)
    N, C, H, W = sr.shape
    base = np.mean(np.abs(sr - hr))

    Rh = bicubic_downsample_matrix(H, H // 2).astype(np.float64)
    Rw = bicubic_downsample_matrix(W, W // 2).astype(np.float64)
    lr = np.einsum('oh,nchw,pw->ncop', Rh, sr, Rw)
    mass = np.mean((lr.mean(axis=(2, 3)) - sr.mean(axis=(2, 3))) ** 2)

    p = np.pad(sr, ((0, 0), (0, 0), (1, 1), (1, 1)))
    lap = (p[:, :, :-2, 1:-1] + p[:, :, 2:, 1:-1]
           + p[:, :, 1:-1, :-2] + p[:, :, 1:-1, 2:] - 4.0 * sr)
    kappa = sr.mean(axis=1, keepdims=True)
    lens = np.mean((lap - 2.0 * kappa) ** 2)
    return float(base + alpha * mass + beta * lens)


if __name__ == "__main__":
    key = jax.random.PRNGKey(0)
    k1, k2, k3, k4 = jax.random.split(key, 4)

    # Primary check: batch=2, channels=1 (the [1,1,3,3] convs force C == 1),
    # spatial 16x16 -> L = 256 (lane-dense), single grid step.
    sr = jax.random.normal(k1, (2, 1, 16, 16), dtype=jnp.float32)
    hr = jax.random.normal(k2, (2, 1, 16, 16), dtype=jnp.float32)
    loss = jax.block_until_ready(physics_constrained_loss(sr, hr))
    ref = reference_loss_np(np.asarray(sr), np.asarray(hr))
    assert np.allclose(float(loss), ref, rtol=2e-4, atol=1e-6), (float(loss), ref)

    # Secondary check: multi-step accumulation, 2-way parallel split and plane
    # padding (P=20, TB=8 -> 3 real blocks -> grid (2, 2) with zero padding).
    sr2 = jax.random.normal(k3, (20, 1, 16, 16), dtype=jnp.float32)
    hr2 = jax.random.normal(k4, (20, 1, 16, 16), dtype=jnp.float32)
    loss2 = jax.block_until_ready(
        physics_constrained_loss(sr2, hr2, planes_per_step=8))
    ref2 = reference_loss_np(np.asarray(sr2), np.asarray(hr2))
    assert np.allclose(float(loss2), ref2, rtol=2e-4, atol=1e-6), (float(loss2), ref2)

    print("KERNEL_OK")
</pallas_src>

<mosaic_0001>
module attributes {stable_mosaic.version = 11 : i64} {
  func.func @_loss_kernel(%arg0: i32, %arg1: i32, %arg2: memref<8x256xf32, #tpu.memory_space<vmem>>, %arg3: memref<8x256xf32, #tpu.memory_space<vmem>>, %arg4: memref<4x256xf32, #tpu.memory_space<vmem>>, %arg5: memref<256x1xf32, #tpu.memory_space<vmem>>, %arg6: memref<1x1x128xf32, #tpu.memory_space<vmem>>, %arg7: memref<3xf32, #tpu.memory_space<smem>>) attributes {dimension_semantics = [#tpu.dimension_semantics<parallel>, #tpu.dimension_semantics<arbitrary>], iteration_bounds = array<i64: 1, 1>, scalar_prefetch = 0 : i64, scratch_operands = 1 : i64, tpu.core_type = #tpu.core_type<tc>, window_params = [{transform_indices = @transform_0, window_bounds = array<i64: 8, 256>}, {transform_indices = @transform_1, window_bounds = array<i64: 8, 256>}, {pipeline_mode = #tpu.pipeline_mode<synchronous>, transform_indices = @transform_2, window_bounds = array<i64: 4, 256>}, {pipeline_mode = #tpu.pipeline_mode<synchronous>, transform_indices = @transform_3, window_bounds = array<i64: 256, 1>}, {transform_indices = @transform_4, window_bounds = array<i64: 1, 1, 128>}]} {
    %c0_i32 = arith.constant 0 : i32
    %0 = arith.cmpi eq, %arg1, %c0_i32 : i32
    %1 = arith.extui %0 : i1 to i32
    %c0_i32_0 = arith.constant 0 : i32
    %2 = arith.cmpi ne, %1, %c0_i32_0 : i32
    scf.if %2 {
      %cst_18 = arith.constant 0.000000e+00 : f32
      %c0_19 = arith.constant 0 : index
      %58 = memref.load %arg7[%c0_19] : memref<3xf32, #tpu.memory_space<smem>>
      memref.store %cst_18, %arg7[%c0_19] : memref<3xf32, #tpu.memory_space<smem>>
      %cst_20 = arith.constant 0.000000e+00 : f32
      %c1_21 = arith.constant 1 : index
      %59 = memref.load %arg7[%c1_21] : memref<3xf32, #tpu.memory_space<smem>>
      memref.store %cst_20, %arg7[%c1_21] : memref<3xf32, #tpu.memory_space<smem>>
      %cst_22 = arith.constant 0.000000e+00 : f32
      %c2_23 = arith.constant 2 : index
      %60 = memref.load %arg7[%c2_23] : memref<3xf32, #tpu.memory_space<smem>>
      memref.store %cst_22, %arg7[%c2_23] : memref<3xf32, #tpu.memory_space<smem>>
    } else {
    }
    %c0 = arith.constant 0 : index
    %c0_1 = arith.constant 0 : index
    %3 = vector.load %arg2[%c0, %c0_1] : memref<8x256xf32, #tpu.memory_space<vmem>>, vector<8x256xf32>
    %c0_2 = arith.constant 0 : index
    %4 = memref.load %arg7[%c0_2] : memref<3xf32, #tpu.memory_space<smem>>
    %c0_3 = arith.constant 0 : index
    %c0_4 = arith.constant 0 : index
    %5 = vector.load %arg3[%c0_3, %c0_4] : memref<8x256xf32, #tpu.memory_space<vmem>>, vector<8x256xf32>
    %6 = arith.subf %3, %5 : vector<8x256xf32>
    %7 = math.absf %6 : vector<8x256xf32>
    %8 = vector.shape_cast %7 : vector<8x256xf32> to vector<1x8x256xf32>
    %cst = arith.constant dense<0.000000e+00> : vector<1xf32>
    %9 = vector.multi_reduction <add>, %8, %cst [1, 2] : vector<1x8x256xf32> to vector<1xf32>
    %10 = vector.shape_cast %9 : vector<1xf32> to vector<1x1x1xf32>
    %11 = vector.extract %10[0, 0, 0] : f32 from vector<1x1x1xf32>
    %12 = arith.addf %4, %11 : f32
    %c0_5 = arith.constant 0 : index
    %13 = memref.load %arg7[%c0_5] : memref<3xf32, #tpu.memory_space<smem>>
    memref.store %12, %arg7[%c0_5] : memref<3xf32, #tpu.memory_space<smem>>
    %c0_6 = arith.constant 0 : index
    %c0_7 = arith.constant 0 : index
    %14 = vector.load %arg5[%c0_6, %c0_7] : memref<256x1xf32, #tpu.memory_space<vmem>>, vector<256x1xf32>
    %cst_8 = arith.constant dense<0.000000e+00> : vector<8x1xf32>
    %15 = tpu.matmul %3, %14, %cst_8 {dimension_numbers = #tpu.dot_dimension_numbers<[1], [0], [0], [1], [0, 0, 1, 1], [], []>} : vector<8x256xf32>, vector<256x1xf32>, vector<8x1xf32> -> vector<8x1xf32>
    %c1 = arith.constant 1 : index
    %16 = memref.load %arg7[%c1] : memref<3xf32, #tpu.memory_space<smem>>
    %17 = arith.mulf %15, %15 : vector<8x1xf32>
    %18 = vector.shape_cast %17 : vector<8x1xf32> to vector<1x8x1xf32>
    %cst_9 = arith.constant dense<0.000000e+00> : vector<1xf32>
    %19 = vector.multi_reduction <add>, %18, %cst_9 [1, 2] : vector<1x8x1xf32> to vector<1xf32>
    %20 = vector.shape_cast %19 : vector<1xf32> to vector<1x1x1xf32>
    %21 = vector.extract %20[0, 0, 0] : f32 from vector<1x1x1xf32>
    %22 = arith.addf %16, %21 : f32
    %c1_10 = arith.constant 1 : index
    %23 = memref.load %arg7[%c1_10] : memref<3xf32, #tpu.memory_space<smem>>
    memref.store %22, %arg7[%c1_10] : memref<3xf32, #tpu.memory_space<smem>>
    %c0_11 = arith.constant 0 : index
    %c0_12 = arith.constant 0 : index
    %24 = vector.load %arg4[%c0_11, %c0_12] : memref<4x256xf32, #tpu.memory_space<vmem>>, vector<4x256xf32>
    %c1_i32 = arith.constant 1 : i32
    %25 = tpu.dynamic_rotate %3 by %c1_i32 dim 1 : vector<8x256xf32>, i32 -> vector<8x256xf32>
    %26 = vector.extract_strided_slice %24 {offsets = [0, 0], sizes = [1, 256], strides = [1, 1]} : vector<4x256xf32> to vector<1x256xf32>
    %27 = vector.broadcast %26 : vector<1x256xf32> to vector<8x256xf32>
    %28 = arith.mulf %25, %27 : vector<8x256xf32>
    %c255_i32 = arith.constant 255 : i32
    %29 = tpu.dynamic_rotate %3 by %c255_i32 dim 1 : vector<8x256xf32>, i32 -> vector<8x256xf32>
    %30 = vector.extract_strided_slice %24 {offsets = [1, 0], sizes = [1, 256], strides = [1, 1]} : vector<4x256xf32> to vector<1x256xf32>
    %31 = vector.broadcast %30 : vector<1x256xf32> to vector<8x256xf32>
    %32 = arith.mulf %29, %31 : vector<8x256xf32>
    %33 = arith.addf %28, %32 : vector<8x256xf32>
    %c16_i32 = arith.constant 16 : i32
    %34 = tpu.dynamic_rotate %3 by %c16_i32 dim 1 : vector<8x256xf32>, i32 -> vector<8x256xf32>
    %35 = vector.extract_strided_slice %24 {offsets = [2, 0], sizes = [1, 256], strides = [1, 1]} : vector<4x256xf32> to vector<1x256xf32>
    %36 = vector.broadcast %35 : vector<1x256xf32> to vector<8x256xf32>
    %37 = arith.mulf %34, %36 : vector<8x256xf32>
    %38 = arith.addf %33, %37 : vector<8x256xf32>
    %c240_i32 = arith.constant 240 : i32
    %39 = tpu.dynamic_rotate %3 by %c240_i32 dim 1 : vector<8x256xf32>, i32 -> vector<8x256xf32>
    %40 = vector.extract_strided_slice %24 {offsets = [3, 0], sizes = [1, 256], strides = [1, 1]} : vector<4x256xf32> to vector<1x256xf32>
    %41 = vector.broadcast %40 : vector<1x256xf32> to vector<8x256xf32>
    %42 = arith.mulf %39, %41 : vector<8x256xf32>
    %43 = arith.addf %38, %42 : vector<8x256xf32>
    %cst_13 = arith.constant 6.000000e+00 : f32
    %44 = vector.broadcast %cst_13 : f32 to vector<8x256xf32>
    %45 = arith.mulf %44, %3 : vector<8x256xf32>
    %46 = arith.subf %43, %45 : vector<8x256xf32>
    %c2 = arith.constant 2 : index
    %47 = memref.load %arg7[%c2] : memref<3xf32, #tpu.memory_space<smem>>
    %48 = arith.mulf %46, %46 : vector<8x256xf32>
    %49 = vector.shape_cast %48 : vector<8x256xf32> to vector<1x8x256xf32>
    %cst_14 = arith.constant dense<0.000000e+00> : vector<1xf32>
    %50 = vector.multi_reduction <add>, %49, %cst_14 [1, 2] : vector<1x8x256xf32> to vector<1xf32>
    %51 = vector.shape_cast %50 : vector<1xf32> to vector<1x1x1xf32>
    %52 = vector.extract %51[0, 0, 0] : f32 from vector<1x1x1xf32>
    %53 = arith.addf %47, %52 : f32
    %c2_15 = arith.constant 2 : index
    %54 = memref.load %arg7[%c2_15] : memref<3xf32, #tpu.memory_space<smem>>
    memref.store %53, %arg7[%c2_15] : memref<3xf32, #tpu.memory_space<smem>>
    %c0_i32_16 = arith.constant 0 : i32
    %55 = arith.cmpi eq, %arg1, %c0_i32_16 : i32
    %56 = arith.extui %55 : i1 to i32
    %c0_i32_17 = arith.constant 0 : i32
    %57 = arith.cmpi ne, %56, %c0_i32_17 : i32
    scf.if %57 {
      %58 = tpu.iota {dimensions = array<i32: 2>} : vector<1x1x128xi32>
      %c0_i32_18 = arith.constant 0 : i32
      %59 = vector.broadcast %c0_i32_18 : i32 to vector<1x1x128xi32>
      %60 = arith.cmpi eq, %58, %59 : vector<1x1x128xi32>
      %c0_19 = arith.constant 0 : index
      %61 = memref.load %arg7[%c0_19] : memref<3xf32, #tpu.memory_space<smem>>
      %c1_i32_20 = arith.constant 1 : i32
      %62 = vector.broadcast %c1_i32_20 : i32 to vector<1x1x128xi32>
      %63 = arith.cmpi eq, %58, %62 : vector<1x1x128xi32>
      %c1_21 = arith.constant 1 : index
      %64 = memref.load %arg7[%c1_21] : memref<3xf32, #tpu.memory_space<smem>>
      %c2_i32 = arith.constant 2 : i32
      %65 = vector.broadcast %c2_i32 : i32 to vector<1x1x128xi32>
      %66 = arith.cmpi eq, %58, %65 : vector<1x1x128xi32>
      %c2_22 = arith.constant 2 : index
      %67 = memref.load %arg7[%c2_22] : memref<3xf32, #tpu.memory_space<smem>>
      %cst_23 = arith.constant 0.000000e+00 : f32
      %68 = vector.broadcast %67 : f32 to vector<1x1x128xf32>
      %69 = vector.broadcast %cst_23 : f32 to vector<1x1x128xf32>
      %70 = arith.select %66, %68, %69 : vector<1x1x128xi1>, vector<1x1x128xf32>
      %71 = vector.broadcast %64 : f32 to vector<1x1x128xf32>
      %72 = arith.select %63, %71, %70 : vector<1x1x128xi1>, vector<1x1x128xf32>
      %73 = vector.broadcast %61 : f32 to vector<1x1x128xf32>
      %74 = arith.select %60, %73, %72 : vector<1x1x128xi1>, vector<1x1x128xf32>
      %c0_24 = arith.constant 0 : index
      %c0_25 = arith.constant 0 : index
      %c0_26 = arith.constant 0 : index
      %75 = vector.load %arg6[%c0_24, %c0_25, %c0_26] : memref<1x1x128xf32, #tpu.memory_space<vmem>>, vector<1x1x128xf32>
      tpu.vector_store %arg6[%c0_24, %c0_25, %c0_26], %74 {strides = array<i32>} : memref<1x1x128xf32, #tpu.memory_space<vmem>>, vector<1x1x128xf32>,
    } else {
    }
    return
  }
  func.func @transform_0(%arg0: i32, %arg1: i32) -> (i32, i32) {
    %c1_i32 = arith.constant 1 : i32
    %0 = arith.muli %arg0, %c1_i32 : i32
    %1 = arith.addi %0, %arg1 : i32
    %c0_i32 = arith.constant 0 : i32
    %c0_i32_0 = arith.constant 0 : i32
    return %1, %c0_i32 : i32, i32
  }
  func.func @transform_1(%arg0: i32, %arg1: i32) -> (i32, i32) {
    %c1_i32 = arith.constant 1 : i32
    %0 = arith.muli %arg0, %c1_i32 : i32
    %1 = arith.addi %0, %arg1 : i32
    %c0_i32 = arith.constant 0 : i32
    %c0_i32_0 = arith.constant 0 : i32
    return %1, %c0_i32 : i32, i32
  }
  func.func @transform_2(%arg0: i32, %arg1: i32) -> (i32, i32) {
    %c0_i32 = arith.constant 0 : i32
    %c0_i32_0 = arith.constant 0 : i32
    %c0_i32_1 = arith.constant 0 : i32
    return %c0_i32, %c0_i32_0 : i32, i32
  }
  func.func @transform_3(%arg0: i32, %arg1: i32) -> (i32, i32) {
    %c0_i32 = arith.constant 0 : i32
    %c0_i32_0 = arith.constant 0 : i32
    %c0_i32_1 = arith.constant 0 : i32
    return %c0_i32, %c0_i32_0 : i32, i32
  }
  func.func @transform_4(%arg0: i32, %arg1: i32) -> (i32, i32, i32) {
    %c0_i32 = arith.constant 0 : i32
    %c0_i32_0 = arith.constant 0 : i32
    %c0_i32_1 = arith.constant 0 : i32
    return %arg0, %c0_i32, %c0_i32_0 : i32, i32, i32
  }
}

</mosaic_0001>

<llo_original>
// kernel: tpu_custom_call.1
$region0: #{tpu_custom_call.1}
  #allocation0 [shape = 'u32[]', space=smem, size = 0x4, offset = 0x4, fixed_abs, tag = 'smem constant byte address 0x4 - core index']
  #allocation1 [shape = 'u32[144,128]{1,0:T(1,128)}', space=vmem, size = 0x12000, scoped, tag = 'internal scratch']
  #allocation2 [shape = 'f32[3]{0:T(128)}', space=smem, size = 0x200, scoped, tag = 'scratch operand']
  %s0 = inlined_call_operand.vmem [shape: f32[8,256], index: 0, kind: input, shape index: {}]
  %s1 = inlined_call_operand.vmem [shape: f32[8,256], index: 1, kind: input, shape index: {}]
  %s2 = inlined_call_operand.vmem [shape: f32[4,256], index: 2, kind: input, shape index: {}]
  %s3 = inlined_call_operand.vmem [shape: f32[256,1], index: 3, kind: input, shape index: {}]
  %s4 = inlined_call_operand.hbm [shape: f32[1,1,128], index: 4, kind: output, shape index: {}]
  %s5 = sld [smem:[#allocation0]]
  $region34: #{tpu_custom_call.1} parent=0
    _
  %s7 = ssub.s32 1, %s5
  %s8 = scalar_select 0, %s7, %s5
  $region1: #{tpu_custom_call.1} parent=0
    #allocation3 [shape = 'u8[512]{0}', space=vmem, size = 0x400, scoped, tag = 'output window, operand 0, single buffered']
    #allocation4 [shape = 's32[1]{0}', space=sflag, size = 0x4, scoped, tag = 'scoped memory for tpu_custom_call.1']
    %9 = vsyncpa [#allocation4], 0
    // Predicated region
    $region2: #{tpu_custom_call.1} parent=1 // pred_check
      _
    $region3: #{tpu_custom_call.1} parent=1 // pred_check_branch
      %11 = sbr.rel (0) target = $region5
    $region4: #{tpu_custom_call.1} parent=1 // pred_region
      %s12 = sadd.s32 0, 0
      %p13 = scmp.lt.s32.totalorder %s12, 0
      %s14 = scalar_select %p13, %s12, 0
      %s15 = smul.addr %s14, 2
      %s16 = smul.addr %s15, 8
      %s17 = scalar_lea.vmem %s0, %s16
      %s18 = sadd.s32 0, 0
    $region5: #{tpu_custom_call.1} parent=1 // pred_fallthru
      _
    // Predicated region
    $region6: #{tpu_custom_call.1} parent=1 // pred_check
      _
    $region7: #{tpu_custom_call.1} parent=1 // pred_check_branch
      %20 = sbr.rel (0) target = $region9
    $region8: #{tpu_custom_call.1} parent=1 // pred_region
      %s21 = sadd.s32 0, 0
      %p22 = scmp.lt.s32.totalorder %s21, 0
      %s23 = scalar_select %p22, %s21, 0
      %s24 = smul.addr %s23, 2
      %s25 = smul.addr %s24, 8
      %s26 = scalar_lea.vmem %s1, %s25
      %s27 = sadd.s32 0, 0
    $region9: #{tpu_custom_call.1} parent=1 // pred_fallthru
      _
    // Predicated region
    $region10: #{tpu_custom_call.1} parent=1 // pred_check
      _
    $region11: #{tpu_custom_call.1} parent=1 // pred_check_branch
      %29 = sbr.rel (0) target = $region13
    $region12: #{tpu_custom_call.1} parent=1 // pred_region
      _
    $region13: #{tpu_custom_call.1} parent=1 // pred_fallthru
      _
    // Predicated region
    $region14: #{tpu_custom_call.1} parent=1 // pred_check
      _
    $region15: #{tpu_custom_call.1} parent=1 // pred_check_branch
      %31 = sbr.rel (0) target = $region17
    $region16: #{tpu_custom_call.1} parent=1 // pred_region
      _
    $region17: #{tpu_custom_call.1} parent=1 // pred_fallthru
      _
    %s32 = sadd.s32 0, 0
    %p33 = scmp.lt.s32.totalorder %s32, 0
    %s34 = scalar_select %p33, %s32, 0
    %s35 = smul.addr %s34, 2
    %s36 = smul.addr %s35, 8
    %s37 = scalar_lea.vmem %s0, %s36
    %s38 = sadd.s32 0, 0
    %p39 = scmp.lt.s32.totalorder %s38, 0
    %s40 = scalar_select %p39, %s38, 0
    %s41 = smul.addr %s40, 2
    %s42 = smul.addr %s41, 8
    %s43 = scalar_lea.vmem %s1, %s42
    %s44 = sadd.s32 0, 0
    %p45 = scmp.lt.s32.totalorder %s44, 0
    %s46 = scalar_select %p45, %s44, 0
    %s47 = smul.addr %s46, 2
    %s48 = smul.addr %s47, 8
    %s49 = scalar_lea.vmem %s0, %s48
    %s50 = sadd.s32 0, 0
    %s51 = sadd.s32 0, 0
    %p52 = scmp.lt.s32.totalorder %s51, 0
    %s53 = scalar_select %p52, %s51, 0
    %s54 = smul.addr %s53, 2
    %s55 = smul.addr %s54, 8
    %s56 = scalar_lea.vmem %s1, %s55
    %s57 = sadd.s32 0, 0
    %p58 = scmp.eq.s32.totalorder 0, 0
    // Predicated region
    $region18: #{tpu_custom_call.1} parent=1 // pred_check
      %p59 = pneg %p58
    $region19: #{tpu_custom_call.1} parent=1 // pred_check_branch
      %61 = sbr.rel (%p59) target = $region21
    $region20: #{tpu_custom_call.1} parent=1 // pred_region
      %s62 = scalar_lea.smem [#allocation2], 0
      %63 = sst [smem:[%s62]] 0.0
      %s64 = scalar_lea.smem [#allocation2], 1
      %65 = sst [smem:[%s64]] 0.0
      %s66 = scalar_lea.smem [#allocation2], 2
      %67 = sst [smem:[%s66]] 0.0
    $region21: #{tpu_custom_call.1} parent=1 // pred_fallthru
      _
    %v68 = vld [vmem:[%s49] sm:$0xff]
    %v69 = vld [vmem:[%s49 + $0x8] sm:$0xff]
    %s70 = sld [smem:[#allocation2]]
    %v71 = vld [vmem:[%s56] sm:$0xff]
    %v72 = vld [vmem:[%s56 + $0x8] sm:$0xff]
    %v73 = vsub.f32 %v68, %v71
    %v74 = vsub.f32 %v69, %v72
    %v75 = vand.u32 2147483647, %v73
    %v76 = vand.u32 2147483647, %v74
    %v77 = vadd.f32 %v75, %v76
    %78 = vadd.xlane.f32.xlu0 %v77
    %v79 = vpop.xlane.xlu0 %78
    %v80 = vrot.slane %v79, 4
    %v81 = vadd.f32 %v79, %v80
    %v82 = vrot.slane %v81, 2
    %v83 = vadd.f32 %v81, %v82
    %v84 = vrot.slane %v83, 1
    %v85 = vadd.f32 %v83, %v84
    %s86 = vtos %v85
    %s87 = sadd.f32 %s70, %s86
    %s88 = scalar_lea.smem [#allocation2], 0
    %89 = sst [smem:[%s88]] %s87
    %v90 = vld [vmem:[%s3] sm:$0xff]
    %v91 = vld [vmem:[%s3 + $0x8] sm:$0xff]
    %v92 = vld [vmem:[%s3 + $0x10] sm:$0xff]
    %v93 = vld [vmem:[%s3 + $0x18] sm:$0xff]
    %v94 = vld [vmem:[%s3 + $0x20] sm:$0xff]
    %v95 = vld [vmem:[%s3 + $0x28] sm:$0xff]
    %v96 = vld [vmem:[%s3 + $0x30] sm:$0xff]
    %v97 = vld [vmem:[%s3 + $0x38] sm:$0xff]
    %v98 = vld [vmem:[%s3 + $0x40] sm:$0xff]
    %v99 = vld [vmem:[%s3 + $0x48] sm:$0xff]
    %v100 = vld [vmem:[%s3 + $0x50] sm:$0xff]
    %v101 = vld [vmem:[%s3 + $0x58] sm:$0xff]
    %v102 = vld [vmem:[%s3 + $0x60] sm:$0xff]
    %v103 = vld [vmem:[%s3 + $0x68] sm:$0xff]
    %v104 = vld [vmem:[%s3 + $0x70] sm:$0xff]
    %v105 = vld [vmem:[%s3 + $0x78] sm:$0xff]
    %v106 = vld [vmem:[%s3 + $0x80] sm:$0xff]
    %v107 = vld [vmem:[%s3 + $0x88] sm:$0xff]
    %v108 = vld [vmem:[%s3 + $0x90] sm:$0xff]
    %v109 = vld [vmem:[%s3 + $0x98] sm:$0xff]
    %v110 = vld [vmem:[%s3 + $0xa0] sm:$0xff]
    %v111 = vld [vmem:[%s3 + $0xa8] sm:$0xff]
    %v112 = vld [vmem:[%s3 + $0xb0] sm:$0xff]
    %v113 = vld [vmem:[%s3 + $0xb8] sm:$0xff]
    %v114 = vld [vmem:[%s3 + $0xc0] sm:$0xff]
    %v115 = vld [vmem:[%s3 + $0xc8] sm:$0xff]
    %v116 = vld [vmem:[%s3 + $0xd0] sm:$0xff]
    %v117 = vld [vmem:[%s3 + $0xd8] sm:$0xff]
    %v118 = vld [vmem:[%s3 + $0xe0] sm:$0xff]
    %v119 = vld [vmem:[%s3 + $0xe8] sm:$0xff]
    %v120 = vld [vmem:[%s3 + $0xf0] sm:$0xff]
    %v121 = vld [vmem:[%s3 + $0xf8] sm:$0xff]
    %122 = vmatprep.subr.mxu0 0.0
    %123 = vmatpush1.msra.mxu0 %v90
    %124 = vmatprep.subr.mxu0 0.0
    %125 = vmatpush1.msra.mxu0 %v91
    %126 = vmatprep.subr.mxu0 0.0
    %127 = vmatpush1.msra.mxu0 %v92
    %128 = vmatprep.subr.mxu0 0.0
    %129 = vmatpush1.msra.mxu0 %v93
    %130 = vmatprep.subr.mxu0 0.0
    %131 = vmatpush1.msra.mxu0 %v94
    %132 = vmatprep.subr.mxu0 0.0
    %133 = vmatpush1.msra.mxu0 %v95
    %134 = vmatprep.subr.mxu0 0.0
    %135 = vmatpush1.msra.mxu0 %v96
    %136 = vmatprep.subr.mxu0 0.0
    %137 = vmatpush1.msra.mxu0 %v97
    %138 = vmatprep.subr.mxu0 0.0
    %139 = vmatpush1.msra.mxu0 %v98
    %140 = vmatprep.subr.mxu0 0.0
    %141 = vmatpush1.msra.mxu0 %v99
    %142 = vmatprep.subr.mxu0 0.0
    %143 = vmatpush1.msra.mxu0 %v100
    %144 = vmatprep.subr.mxu0 0.0
    %145 = vmatpush1.msra.mxu0 %v101
    %146 = vmatprep.subr.mxu0 0.0
    %147 = vmatpush1.msra.mxu0 %v102
    %148 = vmatprep.subr.mxu0 0.0
    %149 = vmatpush1.msra.mxu0 %v103
    %150 = vmatprep.subr.mxu0 0.0
    %151 = vmatpush1.msra.mxu0 %v104
    %152 = vmatprep.subr.mxu0 0.0
    %153 = vmatpush1.msra.mxu0 %v105
    %154 = vmatprep.subr.mxu0 0.0
    %155 = vmatpush1.msra.mxu0 %v106
    %156 = vmatprep.subr.mxu0 0.0
    %157 = vmatpush1.msra.mxu0 %v107
    %158 = vmatprep.subr.mxu0 0.0
    %159 = vmatpush1.msra.mxu0 %v108
    %160 = vmatprep.subr.mxu0 0.0
    %161 = vmatpush1.msra.mxu0 %v109
    %162 = vmatprep.subr.mxu0 0.0
    %163 = vmatpush1.msra.mxu0 %v110
    %164 = vmatprep.subr.mxu0 0.0
    %165 = vmatpush1.msra.mxu0 %v111
    %166 = vmatprep.subr.mxu0 0.0
    %167 = vmatpush1.msra.mxu0 %v112
    %168 = vmatprep.subr.mxu0 0.0
    %169 = vmatpush1.msra.mxu0 %v113
    %170 = vmatprep.subr.mxu0 0.0
    %171 = vmatpush1.msra.mxu0 %v114
    %172 = vmatprep.subr.mxu0 0.0
    %173 = vmatpush1.msra.mxu0 %v115
    %174 = vmatprep.subr.mxu0 0.0
    %175 = vmatpush1.msra.mxu0 %v116
    %176 = vmatprep.subr.mxu0 0.0
    %177 = vmatpush1.msra.mxu0 %v117
    %178 = vmatprep.subr.mxu0 0.0
    %179 = vmatpush1.msra.mxu0 %v118
    %180 = vmatprep.subr.mxu0 0.0
    %181 = vmatpush1.msra.mxu0 %v119
    %182 = vmatprep.subr.mxu0 0.0
    %183 = vmatpush1.msra.mxu0 %v120
    %184 = vmatprep.subr.mxu0 0.0
    %185 = vmatpush1.msra.mxu0 %v121
    %186 = vmatprep.mubr.f32.mxu0 %v69
    %187 = vmatmul.mubr.f32.gmra.mrb[0].mxu0 %v68
    %v188 = vpop.f32.mrb[0].mxu0
    %v189 = vadd.f32 0.0, %v188
    %v190 = vpop.f32.mrb[0].mxu0
    %191 = vdwg.mxu0
    %s192 = sld [smem:[#allocation2 + $0x1]]
    %v193 = vmul.f32 %v189, %v189
    %vm194 = vcmask 7168
    %v195 = vsel %vm194, %v193, 0.0
    %196 = vadd.xlane.f32.xlu0 %v195
    %v197 = vpop.xlane.xlu0 %196
    %v198 = vrot.slane %v197, 4
    %v199 = vadd.f32 %v197, %v198
    %v200 = vrot.slane %v199, 2
    %v201 = vadd.f32 %v199, %v200
    %v202 = vrot.slane %v201, 1
    %v203 = vadd.f32 %v201, %v202
    %s204 = vtos %v203
    %s205 = sadd.f32 %s192, %s204
    %s206 = scalar_lea.smem [#allocation2], 1
    %207 = sst [smem:[%s206]] %s205
    %v208 = vld [vmem:[%s2] sm:$0xff]
    %209 = vrot.lane.b32.xlu0 %v68, 1
    %v210 = vpop.permute.xlu0 %209
    %211 = vrot.lane.b32.xlu0 %v69, 1
    %v212 = vpop.permute.xlu0 %211
    %v213 = vlaneseq
    %v214 = vand.u32 %v213, 127
    %vm215 = vcmp.lt.s32.totalorder %v214, 1
    %v216 = vsel %vm215, %v210, %v212
    %v217 = vsel %vm215, %v212, %v210
    %v219 = vlaneseq
    %v220 = vshrl.u32 %v219, 7
    %v221 = vsub.s32 0, %v220
    %v222 = vrot.slane %v208, %v221
    %v223 = vlaneseq
    %v224 = vshrl.u32 %v223, 7
    %v225 = vsub.s32 4, %v224
    %v226 = vrot.slane %v208, %v225
    %v229 = vlaneseq
    %v230 = vshrl.u32 %v229, 7
    %v231 = vsub.s32 0, %v230
    %v232 = vrot.slane %v222, %v231
    %v233 = vlaneseq
    %v234 = vshrl.u32 %v233, 7
    %v235 = vsub.s32 0, %v234
    %v236 = vrot.slane %v226, %v235
    %v237 = vmul.f32 %v217, %v232
    %v238 = vmul.f32 %v216, %v236
    %239 = vrot.lane.b32.xlu0 %v68, 127
    %v240 = vpop.permute.xlu0 %239
    %241 = vrot.lane.b32.xlu0 %v69, 127
    %v242 = vpop.permute.xlu0 %241
    %vm243 = vcmp.lt.s32.totalorder %v214, 127
    %v244 = vsel %vm243, %v240, %v242
    %v245 = vsel %vm243, %v242, %v240
    %v246 = vlaneseq
    %v247 = vshrl.u32 %v246, 7
    %v248 = vsub.s32 1, %v247
    %v249 = vrot.slane %v208, %v248
    %v250 = vlaneseq
    %v251 = vshrl.u32 %v250, 7
    %v252 = vsub.s32 5, %v251
    %v253 = vrot.slane %v208, %v252
    %v256 = vlaneseq
    %v257 = vshrl.u32 %v256, 7
    %v258 = vsub.s32 1, %v257
    %v259 = vrot.slane %v249, %v258
    %v260 = vlaneseq
    %v261 = vshrl.u32 %v260, 7
    %v262 = vsub.s32 1, %v261
    %v263 = vrot.slane %v253, %v262
    %v264 = vmul.f32 %v244, %v259
    %v265 = vmul.f32 %v245, %v263
    %v266 = vadd.f32 %v237, %v264
    %v267 = vadd.f32 %v238, %v265
    %268 = vrot.lane.b32.xlu0 %v68, 16
    %v269 = vpop.permute.xlu0 %268
    %270 = vrot.lane.b32.xlu0 %v69, 16
    %v271 = vpop.permute.xlu0 %270
    %vm272 = vcmp.lt.s32.totalorder %v214, 16
    %v273 = vsel %vm272, %v269, %v271
    %v274 = vsel %vm272, %v271, %v269
    %v275 = vlaneseq
    %v276 = vshrl.u32 %v275, 7
    %v277 = vsub.s32 2, %v276
    %v278 = vrot.slane %v208, %v277
    %v279 = vlaneseq
    %v280 = vshrl.u32 %v279, 7
    %v281 = vsub.s32 6, %v280
    %v282 = vrot.slane %v208, %v281
    %v285 = vlaneseq
    %v286 = vshrl.u32 %v285, 7
    %v287 = vsub.s32 2, %v286
    %v288 = vrot.slane %v278, %v287
    %v289 = vlaneseq
    %v290 = vshrl.u32 %v289, 7
    %v291 = vsub.s32 2, %v290
    %v292 = vrot.slane %v282, %v291
    %v293 = vmul.f32 %v274, %v288
    %v294 = vmul.f32 %v273, %v292
    %v295 = vadd.f32 %v266, %v293
    %v296 = vadd.f32 %v267, %v294
    %297 = vrot.lane.b32.xlu0 %v68, 112
    %v298 = vpop.permute.xlu0 %297
    %299 = vrot.lane.b32.xlu0 %v69, 112
    %v300 = vpop.permute.xlu0 %299
    %vm301 = vcmp.lt.s32.totalorder %v214, 112
    %v302 = vsel %vm301, %v298, %v300
    %v303 = vsel %vm301, %v300, %v298
    %v304 = vlaneseq
    %v305 = vshrl.u32 %v304, 7
    %v306 = vsub.s32 3, %v305
    %v307 = vrot.slane %v208, %v306
    %v308 = vlaneseq
    %v309 = vshrl.u32 %v308, 7
    %v310 = vsub.s32 7, %v309
    %v311 = vrot.slane %v208, %v310
    %v314 = vlaneseq
    %v315 = vshrl.u32 %v314, 7
    %v316 = vsub.s32 3, %v315
    %v317 = vrot.slane %v307, %v316
    %v318 = vlaneseq
    %v319 = vshrl.u32 %v318, 7
    %v320 = vsub.s32 3, %v319
    %v321 = vrot.slane %v311, %v320
    %v322 = vmul.f32 %v302, %v317
    %v323 = vmul.f32 %v303, %v321
    %v324 = vadd.f32 %v295, %v322
    %v325 = vadd.f32 %v296, %v323
    %v326 = vmul.f32 %v68, 6.0
    %v327 = vmul.f32 %v69, 6.0
    %v328 = vsub.f32 %v324, %v326
    %v329 = vsub.f32 %v325, %v327
    %s330 = sld [smem:[#allocation2 + $0x2]]
    %v331 = vmul.f32 %v328, %v328
    %v332 = vmul.f32 %v329, %v329
    %v333 = vadd.f32 %v331, %v332
    %334 = vadd.xlane.f32.xlu0 %v333
    %v335 = vpop.xlane.xlu0 %334
    %v336 = vrot.slane %v335, 4
    %v337 = vadd.f32 %v335, %v336
    %v338 = vrot.slane %v337, 2
    %v339 = vadd.f32 %v337, %v338
    %v340 = vrot.slane %v339, 1
    %v341 = vadd.f32 %v339, %v340
    %s342 = vtos %v341
    %s343 = sadd.f32 %s330, %s342
    %s344 = scalar_lea.smem [#allocation2], 2
    %345 = sst [smem:[%s344]] %s343
    // Predicated region
    $region22: #{tpu_custom_call.1} parent=1 // pred_check
      %p346 = pneg %p58
    $region23: #{tpu_custom_call.1} parent=1 // pred_check_branch
      %348 = sbr.rel (%p346) target = $region25
    $region24: #{tpu_custom_call.1} parent=1 // pred_region
      %vm349 = vcmp.eq.s32.totalorder %v214, 0
      %s350 = sld [smem:[#allocation2]]
      %vm351 = vcmp.eq.s32.totalorder %v214, 1
      %s352 = sld [smem:[#allocation2 + $0x1]]
      %vm353 = vcmp.eq.s32.totalorder %v214, 2
      %s354 = sld [smem:[#allocation2 + $0x2]]
      %v355 = vstv %s354
      %v356 = vsel %vm353, %v355, 0.0
      %v357 = vstv %s352
      %v358 = vsel %vm351, %v357, %v356
      %v359 = vstv %s350
      %v360 = vsel %vm349, %v359, %v358
      %361 = vst [vmem:[#allocation3] sm:$0x1] %v360
    $region25: #{tpu_custom_call.1} parent=1 // pred_fallthru
      _
    // Predicated region
    $region26: #{tpu_custom_call.1} parent=1 // pred_check
      _
    $region27: #{tpu_custom_call.1} parent=1 // pred_check_branch
      %363 = sbr.rel (0) target = $region29
    $region28: #{tpu_custom_call.1} parent=1 // pred_region
      %s365 = ssub.s32 16, 16
      %366 = vsyncadd [#allocation4], %s365
      %s368 = sshll.u32 [#allocation3], 4
      %s369 = int_to_ptr.vmem [resolvable:$true] %s368
      %371 = dma.vmem_to_hbm [thread:$0]  %s369, 16, %s4, [#allocation4]
    $region29: #{tpu_custom_call.1} parent=1 // pred_fallthru
      _
    // Predicated region
    $region30: #{tpu_custom_call.1} parent=1 // pred_check
      _
    $region31: #{tpu_custom_call.1} parent=1 // pred_check_branch
      %373 = sbr.rel (0) target = $region33
    $region32: #{tpu_custom_call.1} parent=1 // pred_region
      %374 = dma.done [#allocation4], 16
    $region33: #{tpu_custom_call.1} parent=1 // pred_fallthru
      _
    %375 = vsyncpa [#allocation4], 1

</llo_original>
